<compile_context>
chip_gen: v7x
topology: tpu7x:2x2x1
jax: 0.10.0
libtpu: 0.0.40
codegen_flags: <defaults>
</compile_context>

<pallas_src>
import functools

import jax
import jax.numpy as jnp
from jax.experimental import pallas as pl
from jax.experimental.pallas import tpu as pltpu


def _mult_tanh_kernel(x_ref, o_ref, *, mult):
    # tanh runs on the EUP, the scale on the VPU; both are hidden behind the
    # HBM stream for this memory-bound kernel. Math stays in the loaded dtype.
    x = x_ref[...]
    o_ref[...] = jnp.tanh(x) * jnp.asarray(mult, x.dtype)


def _run_2d(x2, mult, *, target_block_bytes=2 * 1024 * 1024):
    """Run the elementwise kernel on a lane-dense 2D slab of shape (rows, W)."""
    rows, width = x2.shape
    itemsize = jnp.dtype(x2.dtype).itemsize
    bytes_per_row = width * itemsize

    # Rows per block: aim for ~2 MiB blocks (the measured ~85% HBM-roofline
    # plateau) while respecting the (8, 128) block tiling rule. A partial final
    # block is handled by Pallas's masked writes (no wrapper pad/slice needed).
    tile_r = max(1, target_block_bytes // bytes_per_row)
    if tile_r >= rows:
        tile_r = rows                        # single full-extent block
    else:
        tile_r = max(8, (tile_r // 8) * 8)   # keep sublane tiling clean

    grid = (pl.cdiv(rows, tile_r),)

    n_elems = rows * width
    cost = pl.CostEstimate(
        flops=n_elems,
        transcendentals=n_elems,
        bytes_accessed=2 * n_elems * itemsize,
    )

    kernel = functools.partial(_mult_tanh_kernel, mult=float(mult))

    return pl.pallas_call(
        kernel,
        out_shape=jax.ShapeDtypeStruct((rows, width), x2.dtype),
        grid_spec=pltpu.PrefetchScalarGridSpec(
            num_scalar_prefetch=0,
            grid=grid,
            in_specs=[pl.BlockSpec((tile_r, width), lambda i: (i, 0))],
            out_specs=pl.BlockSpec((tile_r, width), lambda i: (i, 0)),
        ),
        compiler_params=pltpu.CompilerParams(
            dimension_semantics=("parallel",),
        ),
        cost_estimate=cost,
    )(x2)


def mult_tanh(x, mult=1.0):
    """tanh(x) * mult via a Pallas TPU kernel. Works for any rank/shape/dtype."""
    orig_shape = x.shape
    n = x.size
    if n == 0:
        return x

    flat = x.reshape(-1)

    # Pick the widest lane dimension (multiple of 128, <= 2048) that divides
    # the flattened size so kernel I/O is fully lane-dense with zero padding.
    width = None
    for cand in (2048, 1024, 512, 384, 256, 128):
        if n % cand == 0:
            width = cand
            break

    if width is not None:
        out = _run_2d(flat.reshape(n // width, width), mult)
        return out.reshape(orig_shape)

    # Awkward sizes: fall back to a single pad + slice around a lane-dense run.
    width = 512
    padded = pl.cdiv(n, width) * width
    flat_p = jnp.pad(flat, (0, padded - n))
    out = _run_2d(flat_p.reshape(padded // width, width), mult)
    return out.reshape(-1)[:n].reshape(orig_shape)


if __name__ == "__main__":
    key = jax.random.PRNGKey(0)
    mult = 2.5  # MultTanh(mult=2.5)

    # Main NCHW-like input matching the module's elementwise forward.
    x = jax.random.normal(key, (2, 4, 16, 16), dtype=jnp.float32)
    y = mult_tanh(x, mult)
    jax.block_until_ready(y)
    y_ref = jnp.tanh(x) * mult
    assert y.shape == x.shape and y.dtype == x.dtype
    assert jnp.allclose(y, y_ref, atol=1e-5, rtol=1e-5)

    # Awkward size (exercises the padded fallback path).
    k1, k2 = jax.random.split(key)
    x2 = jax.random.normal(k1, (3, 5, 7), dtype=jnp.float32)
    y2 = mult_tanh(x2, mult)
    jax.block_until_ready(y2)
    assert jnp.allclose(y2, jnp.tanh(x2) * mult, atol=1e-5, rtol=1e-5)

    # Multi-block + ragged final block path (bf16 I/O halves HBM traffic).
    x3 = jax.random.normal(k2, (1000, 640), dtype=jnp.bfloat16)
    y3 = mult_tanh(x3, mult)
    jax.block_until_ready(y3)
    assert y3.dtype == x3.dtype
    assert jnp.allclose(
        y3.astype(jnp.float32),
        jnp.tanh(x3.astype(jnp.float32)) * mult,
        atol=2e-2, rtol=2e-2,
    )

    print("KERNEL_OK")
</pallas_src>

<mosaic_0001>
module attributes {stable_mosaic.version = 11 : i64} {
  func.func @_mult_tanh_kernel(%arg0: i32, %arg1: memref<1x2048xf32, #tpu.memory_space<vmem>>, %arg2: memref<1x2048xf32, #tpu.memory_space<vmem>>) attributes {dimension_semantics = [#tpu.dimension_semantics<parallel>], iteration_bounds = array<i64: 1>, scalar_prefetch = 0 : i64, scratch_operands = 0 : i64, tpu.core_type = #tpu.core_type<tc>, window_params = [{transform_indices = @transform_0, window_bounds = array<i64: 1, 2048>}, {transform_indices = @transform_1, window_bounds = array<i64: 1, 2048>}]} {
    %c0 = arith.constant 0 : index
    %c0_0 = arith.constant 0 : index
    %0 = vector.load %arg1[%c0, %c0_0] : memref<1x2048xf32, #tpu.memory_space<vmem>>, vector<1x2048xf32>
    %1 = math.tanh %0 : vector<1x2048xf32>
    %cst = arith.constant 2.500000e+00 : f32
    %2 = vector.broadcast %cst : f32 to vector<1x2048xf32>
    %3 = arith.mulf %1, %2 : vector<1x2048xf32>
    %c0_1 = arith.constant 0 : index
    %c0_2 = arith.constant 0 : index
    %4 = vector.load %arg2[%c0_1, %c0_2] : memref<1x2048xf32, #tpu.memory_space<vmem>>, vector<1x2048xf32>
    tpu.vector_store %arg2[%c0_1, %c0_2], %3 {strides = array<i32>} : memref<1x2048xf32, #tpu.memory_space<vmem>>, vector<1x2048xf32>,
    return
  }
  func.func @transform_0(%arg0: i32) -> (i32, i32) {
    %c0_i32 = arith.constant 0 : i32
    %c0_i32_0 = arith.constant 0 : i32
    return %arg0, %c0_i32 : i32, i32
  }
  func.func @transform_1(%arg0: i32) -> (i32, i32) {
    %c0_i32 = arith.constant 0 : i32
    %c0_i32_0 = arith.constant 0 : i32
    return %arg0, %c0_i32 : i32, i32
  }
}

</mosaic_0001>

<llo_original>
// kernel: tpu_custom_call.1
$region0: #{tpu_custom_call.1}
  #allocation0 [shape = 'u32[]', space=smem, size = 0x4, offset = 0x4, fixed_abs, tag = 'smem constant byte address 0x4 - core index']
  #allocation1 [shape = 'u32[144,128]{1,0:T(1,128)}', space=vmem, size = 0x12000, scoped, tag = 'internal scratch']
  %s0 = inlined_call_operand.hbm [shape: f32[1,2048], index: 0, kind: input, shape index: {}]
  %s1 = inlined_call_operand.hbm [shape: f32[1,2048], index: 1, kind: output, shape index: {}]
  %s2 = sld [smem:[#allocation0]]
  $region18: #{tpu_custom_call.1} parent=0
    _
  %s4 = ssub.s32 1, %s2
  %s5 = scalar_select 0, %s4, %s2
  $region1: #{tpu_custom_call.1} parent=0
    #allocation2 [shape = 'u8[8192]{0}', space=vmem, size = 0x2000, scoped, tag = 'input window, operand 0, single buffered']
    #allocation3 [shape = 's32[1]{0}', space=sflag, size = 0x4, scoped, tag = 'scoped memory for tpu_custom_call.1']
    #allocation4 [shape = 's32[1]{0}', space=sflag, size = 0x4, scoped, tag = 'scoped memory for tpu_custom_call.1']
    #allocation5 [shape = 'u8[8192]{0}', space=vmem, size = 0x2000, scoped, tag = 'output window, operand 0, single buffered']
    %6 = vsyncpa [#allocation3], 0
    %7 = vsyncpa [#allocation4], 0
    // Predicated region
    $region2: #{tpu_custom_call.1} parent=1 // pred_check
      _
    $region3: #{tpu_custom_call.1} parent=1 // pred_check_branch
      %9 = sbr.rel (0) target = $region5
    $region4: #{tpu_custom_call.1} parent=1 // pred_region
      %s11 = ssub.s32 256, 256
      %12 = vsyncadd [#allocation3], %s11
      %s14 = sshll.u32 [#allocation2], 4
      %s15 = int_to_ptr.vmem [resolvable:$true] %s14
      %17 = dma.hbm_to_vmem [thread:$0]  %s0, 256, %s15, [#allocation3]
    $region5: #{tpu_custom_call.1} parent=1 // pred_fallthru
      _
    // Predicated region
    $region6: #{tpu_custom_call.1} parent=1 // pred_check
      _
    $region7: #{tpu_custom_call.1} parent=1 // pred_check_branch
      %19 = sbr.rel (0) target = $region9
    $region8: #{tpu_custom_call.1} parent=1 // pred_region
      %20 = dma.done [#allocation3], 256
    $region9: #{tpu_custom_call.1} parent=1 // pred_fallthru
      _
    %v21 = vld [vmem:[#allocation2] sm:$0xff]
    %v22 = vld [vmem:[#allocation2 + $0x8] sm:$0xff]
    %v23 = vtanh.pop %v21
    %v24 = vtanh.pop %v22
    %v25 = vmul.f32 %v23, 2.5
    %v26 = vmul.f32 %v24, 2.5
    %27 = vst [vmem:[#allocation5] sm:$0xff] %v25
    %28 = vst [vmem:[#allocation5 + $0x8] sm:$0xff] %v26
    // Predicated region
    $region10: #{tpu_custom_call.1} parent=1 // pred_check
      _
    $region11: #{tpu_custom_call.1} parent=1 // pred_check_branch
      %30 = sbr.rel (0) target = $region13
    $region12: #{tpu_custom_call.1} parent=1 // pred_region
      %s32 = ssub.s32 256, 256
      %33 = vsyncadd [#allocation4], %s32
      %s35 = sshll.u32 [#allocation5], 4
      %s36 = int_to_ptr.vmem [resolvable:$true] %s35
      %38 = dma.vmem_to_hbm [thread:$0]  %s36, 256, %s1, [#allocation4]
    $region13: #{tpu_custom_call.1} parent=1 // pred_fallthru
      _
    // Predicated region
    $region14: #{tpu_custom_call.1} parent=1 // pred_check
      _
    $region15: #{tpu_custom_call.1} parent=1 // pred_check_branch
      %40 = sbr.rel (0) target = $region17
    $region16: #{tpu_custom_call.1} parent=1 // pred_region
      %41 = dma.done [#allocation4], 256
    $region17: #{tpu_custom_call.1} parent=1 // pred_fallthru
      _
    %42 = vsyncpa [#allocation3], 1
    %43 = vsyncpa [#allocation4], 1

</llo_original>
